<compile_context>
chip_gen: v7x
topology: tpu7x:2x2x1
jax: 0.10.0
libtpu: 0.0.40
codegen_flags: <defaults>
</compile_context>

<pallas_src>
import functools

import jax
import jax.numpy as jnp
from jax import lax
from jax.experimental import pallas as pl
from jax.experimental.pallas import tpu as pltpu

EPS = 1e-08

_VMEM_LIMIT_BYTES = 40 * 1024 * 1024     # requested scoped-VMEM limit (safe on v7x: 64 MiB phys)
_SINGLE_PASS_BUDGET = 12 * 1024 * 1024   # per-sample footprint gate for the fused single-pass path
_TWO_PASS_BUDGET = 16 * 1024 * 1024      # per-step footprint budget for the tiled two-pass path
_BF16_MIN_CIN = 64                       # use bf16 MXU operands only for larger contractions


def _round_up(x, m):
    return (x + m - 1) // m * m


# --------------------------------------------------------------------------------------
# shared compute helpers
# --------------------------------------------------------------------------------------
def _depthwise_prelu(x_win, w_all, a, *, kernel_size, dilation, t_len):
    """Depthwise conv (stride 1) + PReLU over a (c_in, t_len) output span.

    x_win: ref/view of shape (c_in, t_len + dilation*(kernel_size-1)).
    w_all: (c_in, K) f32 value (loaded once per grid step).
    a:     (c_in, 1) f32 PReLU slopes (per-channel or broadcast single slope).
    """
    c_in = w_all.shape[0]
    y = jnp.zeros((c_in, t_len), jnp.float32)
    for k in range(kernel_size):                 # K is small -> static unroll
        start = k * dilation                     # static offset into the window
        xk = x_win[:, start:start + t_len].astype(jnp.float32)
        y = y + w_all[:, k:k + 1] * xk
    return jnp.where(y >= 0.0, y, a * y)


def _pointwise(w, yn, bias, *, c_in):
    """Pointwise (1x1) conv through the MXU; bf16 operands for large channel counts."""
    if c_in >= _BF16_MIN_CIN:
        # v6e/v7x MXUs are bf16-native; after LayerNorm the precision loss is negligible.
        acc = jnp.dot(w.astype(jnp.bfloat16), yn.astype(jnp.bfloat16),
                      preferred_element_type=jnp.float32)
    else:
        acc = jnp.dot(w.astype(jnp.float32), yn, preferred_element_type=jnp.float32)
    return acc + bias.astype(jnp.float32)


def _window_copy(x_hbm, xbuf, sem, b, tile_idx, slot, *, t_tile, t_win):
    """Async DMA of one halo'd (c_in, t_win) window of the padded input into slot `slot`."""
    return pltpu.make_async_copy(
        x_hbm.at[b, :, pl.ds(tile_idx * t_tile, t_win)],
        xbuf.at[slot],
        sem.at[slot])


# --------------------------------------------------------------------------------------
# path A: single fused kernel (whole sample resident in VMEM)
# --------------------------------------------------------------------------------------
def _fused_kernel(x_ref, wdw_ref, a_ref, wpw_ref, bias_ref, o_ref, *,
                  kernel_size, dilation, t_out, c_in):
    # x_ref: (c_in, t_out + halo)    zero-padded input for one batch element
    # o_ref: (c_out, t_out)
    w_all = wdw_ref[...].astype(jnp.float32)
    a = a_ref[...].astype(jnp.float32)
    y = _depthwise_prelu(x_ref, w_all, a, kernel_size=kernel_size,
                         dilation=dilation, t_len=t_out)

    # Exact two-pass mean/var (no E[y^2]-E[y]^2 cancellation) over the resident y.
    count = float(c_in * t_out)
    mean = jnp.sum(jnp.sum(y, axis=1, keepdims=True), axis=0, keepdims=True) / count
    d = y - mean
    var = jnp.sum(jnp.sum(d * d, axis=1, keepdims=True), axis=0, keepdims=True) / count
    rstd = lax.rsqrt(var + EPS)

    out = _pointwise(wpw_ref[...], d * rstd, bias_ref[...], c_in=c_in)
    o_ref[...] = out.astype(o_ref.dtype)


# --------------------------------------------------------------------------------------
# path B pass 1: depthwise + PReLU + global sum / sum-of-squares -> mean, rstd
# --------------------------------------------------------------------------------------
def _stats_kernel(x_hbm, wdw_ref, a_ref, stats_ref, xbuf, sem, acc_ref, *,
                  kernel_size, dilation, t_tile, t_win, t_out, c_in):
    b = pl.program_id(0)
    tt = pl.program_id(1)
    nt = pl.num_programs(1)
    slot = tt % 2

    # manual double-buffered halo window fetch (no host-side window materialization)
    @pl.when(tt == 0)
    def _():
        acc_ref[...] = jnp.zeros_like(acc_ref)
        _window_copy(x_hbm, xbuf, sem, b, tt, slot, t_tile=t_tile, t_win=t_win).start()

    @pl.when(tt + 1 < nt)
    def _():
        _window_copy(x_hbm, xbuf, sem, b, tt + 1, 1 - slot,
                     t_tile=t_tile, t_win=t_win).start()

    _window_copy(x_hbm, xbuf, sem, b, tt, slot, t_tile=t_tile, t_win=t_win).wait()

    w_all = wdw_ref[...].astype(jnp.float32)
    a = a_ref[...].astype(jnp.float32)
    y = _depthwise_prelu(xbuf.at[slot], w_all, a, kernel_size=kernel_size,
                         dilation=dilation, t_len=t_tile)

    def _accumulate(yv):
        acc_ref[0:1, :] += jnp.sum(yv, axis=0, keepdims=True)
        acc_ref[1:2, :] += jnp.sum(yv * yv, axis=0, keepdims=True)

    if t_out % t_tile == 0:
        _accumulate(y)
    else:
        # tail mask only on the (dynamically) last tile; full tiles skip the extra VPU ops
        @pl.when(tt < nt - 1)
        def _():
            _accumulate(y)

        @pl.when(tt == nt - 1)
        def _():
            col = lax.broadcasted_iota(jnp.int32, (c_in, t_tile), 1)
            _accumulate(jnp.where(col < (t_out - tt * t_tile), y, 0.0))

    @pl.when(tt == nt - 1)
    def _():
        count = float(c_in * t_out)
        s = jnp.sum(acc_ref[0:1, :], axis=1, keepdims=True)      # (1, 1)
        ss = jnp.sum(acc_ref[1:2, :], axis=1, keepdims=True)     # (1, 1)
        mean = s / count
        var = jnp.maximum(ss / count - mean * mean, 0.0)         # guard cancellation
        rstd = lax.rsqrt(var + EPS)                              # one rsqrt on the EUP
        stats_ref[0:1, :] = jnp.broadcast_to(mean, (1, 128))
        stats_ref[1:2, :] = jnp.broadcast_to(rstd, (1, 128))


# --------------------------------------------------------------------------------------
# path B pass 2: recompute depthwise + PReLU, normalize, pointwise conv, write t_out
# --------------------------------------------------------------------------------------
def _apply_kernel(x_hbm, wdw_ref, a_ref, stats_ref, wpw_ref, bias_ref, o_ref,
                  xbuf, sem, *, kernel_size, dilation, t_tile, t_win, c_in):
    b = pl.program_id(0)
    tt = pl.program_id(1)
    nt = pl.num_programs(1)
    slot = tt % 2

    @pl.when(tt == 0)
    def _():
        _window_copy(x_hbm, xbuf, sem, b, tt, slot, t_tile=t_tile, t_win=t_win).start()

    @pl.when(tt + 1 < nt)
    def _():
        _window_copy(x_hbm, xbuf, sem, b, tt + 1, 1 - slot,
                     t_tile=t_tile, t_win=t_win).start()

    _window_copy(x_hbm, xbuf, sem, b, tt, slot, t_tile=t_tile, t_win=t_win).wait()

    w_all = wdw_ref[...].astype(jnp.float32)
    a = a_ref[...].astype(jnp.float32)
    y = _depthwise_prelu(xbuf.at[slot], w_all, a, kernel_size=kernel_size,
                         dilation=dilation, t_len=t_tile)

    # stats block is constant across tt for a given b -> Pallas fetches it once per b.
    # TODO(synk): plumb mean/rstd through SMEM scalars instead of a (2,128) VMEM tile.
    mean = stats_ref[0:1, 0:1]
    rstd = stats_ref[1:2, 0:1]
    yn = (y - mean) * rstd                      # gamma/beta are folded on the host

    out = _pointwise(wpw_ref[...], yn, bias_ref[...], c_in=c_in)
    o_ref[...] = out.astype(o_ref.dtype)        # last partial block store is masked by Pallas


# --------------------------------------------------------------------------------------
# wrapper
# --------------------------------------------------------------------------------------
def depthwise_separable_conv(x, w_dw, prelu_a, gamma, beta, w_pw, *, kernel_size,
                             stride, padding, dilation, t_tile=1024,
                             force_two_pass=False):
    """x: (N, C_in, T) float32. Returns (N, C_out, T_out)."""
    # TODO(synk): stride > 1 would need a strided lane gather; only stride=1 implemented.
    assert stride == 1, "only stride=1 implemented in the kernel"
    n, c_in, t = x.shape
    c_out = w_pw.shape[0]
    halo = dilation * (kernel_size - 1)
    t_out = (t + 2 * padding - halo - 1) // stride + 1
    assert t_out > 0
    itemsize = 4  # f32

    # ---- fold gamma/beta into the pointwise conv; per-channel PReLU slopes ----------
    w_pw2 = w_pw.reshape(c_out, c_in)
    w_pw_eff = (w_pw2 * gamma.reshape(1, c_in)).astype(jnp.float32)        # (C_out, C_in)
    bias_eff = (w_pw2 @ beta.reshape(c_in, 1)).astype(jnp.float32)         # (C_out, 1)
    a_flat = prelu_a.reshape(-1).astype(jnp.float32)
    if a_flat.shape[0] == 1:
        a_eff = jnp.broadcast_to(a_flat.reshape(1, 1), (c_in, 1))
    else:
        assert a_flat.shape[0] == c_in, "PReLU slopes must be scalar or per-channel"
        a_eff = a_flat.reshape(c_in, 1)

    # ---- path A: fused single pass when one sample fits the VMEM budget -------------
    t_pad_len = t + 2 * padding                 # == t_out + halo for stride 1
    single_pass_bytes = itemsize * (2 * c_in * t_pad_len      # double-buffered x block
                                    + 2 * c_out * t_out       # double-buffered out block
                                    + 4 * c_in * t_out)       # live intermediates (y, yn, ...)
    if (not force_two_pass) and single_pass_bytes <= _SINGLE_PASS_BUDGET:
        x_pad = jnp.pad(x, ((0, 0), (0, 0), (padding, padding)))
        return pl.pallas_call(
            functools.partial(_fused_kernel, kernel_size=kernel_size,
                              dilation=dilation, t_out=t_out, c_in=c_in),
            out_shape=jax.ShapeDtypeStruct((n, c_out, t_out), x.dtype),
            grid=(n,),
            in_specs=[
                pl.BlockSpec((None, c_in, t_pad_len), lambda b: (b, 0, 0)),
                pl.BlockSpec((c_in, kernel_size), lambda b: (0, 0)),
                pl.BlockSpec((c_in, 1), lambda b: (0, 0)),
                pl.BlockSpec((c_out, c_in), lambda b: (0, 0)),
                pl.BlockSpec((c_out, 1), lambda b: (0, 0)),
            ],
            out_specs=pl.BlockSpec((None, c_out, t_out), lambda b: (b, 0, 0)),
            compiler_params=pltpu.CompilerParams(
                dimension_semantics=("parallel",),
                vmem_limit_bytes=_VMEM_LIMIT_BYTES),
        )(x_pad, w_dw, a_eff, w_pw_eff, bias_eff)

    # ---- path B: two-pass tiled (arbitrary T), in-kernel halo windows ----------------
    # Lane-dense, 128-multiple time tiles; shrink to honor the per-step VMEM budget
    # (v7x only has 64 MiB physical VMEM -- do not assume v5e/v6e's 128 MiB).
    t_tile_eff = max(128, min(_round_up(t_tile, 128), _round_up(t_out, 128)))

    def _footprint(tt_):
        t_win_ = tt_ + halo
        return itemsize * (2 * c_in * t_win_   # manual double-buffered x windows
                           + 2 * c_out * tt_   # double-buffered output block
                           + 2 * tt_           # sum / sum-of-squares accumulator
                           + 4 * c_in * tt_)   # live intermediates

    while t_tile_eff > 128 and _footprint(t_tile_eff) > _TWO_PASS_BUDGET:
        t_tile_eff = max(128, _round_up(t_tile_eff // 2, 128))

    nt = pl.cdiv(t_out, t_tile_eff)
    t_win = t_tile_eff + halo

    # Single zero-pad (conv padding + tail so every window DMA stays in bounds).
    # No halo'd copy of the input is materialized; windows are DMA'd in-kernel.
    ext = nt * t_tile_eff + halo
    x_ext = jnp.pad(x, ((0, 0), (0, 0), (padding, ext - t - padding)))

    # TODO(synk): for v7x with N < 2, split the pass-1 time-tile reduction across the
    # two TensorCores (partial sums combined in pass 2) to use both cores.
    stats = pl.pallas_call(
        functools.partial(_stats_kernel, kernel_size=kernel_size, dilation=dilation,
                          t_tile=t_tile_eff, t_win=t_win, t_out=t_out, c_in=c_in),
        out_shape=jax.ShapeDtypeStruct((n, 2, 128), jnp.float32),
        grid=(n, nt),
        in_specs=[
            pl.BlockSpec(memory_space=pl.ANY),                          # x_ext stays in HBM
            pl.BlockSpec((c_in, kernel_size), lambda b, tt: (0, 0)),
            pl.BlockSpec((c_in, 1), lambda b, tt: (0, 0)),
        ],
        out_specs=pl.BlockSpec((None, 2, 128), lambda b, tt: (b, 0, 0)),
        scratch_shapes=[
            pltpu.VMEM((2, c_in, t_win), x.dtype),                      # window double-buffer
            pltpu.SemaphoreType.DMA((2,)),
            pltpu.VMEM((2, t_tile_eff), jnp.float32),                   # sum / sumsq accumulators
        ],
        compiler_params=pltpu.CompilerParams(
            dimension_semantics=("parallel", "arbitrary"),
            vmem_limit_bytes=_VMEM_LIMIT_BYTES),
    )(x_ext, w_dw, a_eff)

    out = pl.pallas_call(
        functools.partial(_apply_kernel, kernel_size=kernel_size, dilation=dilation,
                          t_tile=t_tile_eff, t_win=t_win, c_in=c_in),
        out_shape=jax.ShapeDtypeStruct((n, c_out, t_out), x.dtype),     # direct t_out, no slice
        grid=(n, nt),
        in_specs=[
            pl.BlockSpec(memory_space=pl.ANY),
            pl.BlockSpec((c_in, kernel_size), lambda b, tt: (0, 0)),
            pl.BlockSpec((c_in, 1), lambda b, tt: (0, 0)),
            pl.BlockSpec((None, 2, 128), lambda b, tt: (b, 0, 0)),
            pl.BlockSpec((c_out, c_in), lambda b, tt: (0, 0)),
            pl.BlockSpec((c_out, 1), lambda b, tt: (0, 0)),
        ],
        out_specs=pl.BlockSpec((None, c_out, t_tile_eff), lambda b, tt: (b, 0, tt)),
        scratch_shapes=[
            pltpu.VMEM((2, c_in, t_win), x.dtype),
            pltpu.SemaphoreType.DMA((2,)),
        ],
        compiler_params=pltpu.CompilerParams(
            dimension_semantics=("parallel", "arbitrary"),
            vmem_limit_bytes=_VMEM_LIMIT_BYTES),
    )(x_ext, w_dw, a_eff, stats, w_pw_eff, bias_eff)

    return out


# --------------------------------------------------------------------------------------
# pure-JAX reference (mirrors the PyTorch module)
# --------------------------------------------------------------------------------------
def _reference(x, w_dw, prelu_a, gamma, beta, w_pw, *, kernel_size, stride,
               padding, dilation):
    c_in = x.shape[1]
    y = lax.conv_general_dilated(
        x, w_dw.reshape(c_in, 1, kernel_size),
        window_strides=(stride,), padding=[(padding, padding)],
        rhs_dilation=(dilation,), feature_group_count=c_in,
        dimension_numbers=("NCH", "OIH", "NCH"))
    a = prelu_a.reshape(-1)
    a = a[0] if a.shape[0] == 1 else a.reshape(1, c_in, 1)
    y = jnp.where(y >= 0, y, a * y)
    mean = jnp.mean(y, axis=(1, 2), keepdims=True)
    var = jnp.mean((y - mean) ** 2, axis=(1, 2), keepdims=True)
    y = gamma.reshape(1, c_in, 1) * (y - mean) / jnp.sqrt(var + EPS) + beta.reshape(1, c_in, 1)
    return jnp.einsum("oc,nct->not", w_pw.reshape(-1, c_in), y)


if __name__ == "__main__":
    # module hyperparameters
    in_channels, out_channels = 4, 8
    kernel_size, stride, padding, dilation = 3, 1, 2, 2

    key = jax.random.PRNGKey(0)
    kx, kdw, kpw, kg, kb, kx2 = jax.random.split(key, 6)

    # deterministic parameters (shapes from __init__); gamma/beta perturbed so the
    # gamma/beta folding is actually validated.
    w_dw = jax.random.normal(kdw, (in_channels, kernel_size), jnp.float32) * 0.1
    w_pw = jax.random.normal(kpw, (out_channels, in_channels), jnp.float32) * 0.1
    prelu_a = jnp.full((1,), 0.25, jnp.float32)                      # nn.PReLU default
    gamma = 1.0 + 0.1 * jax.random.normal(kg, (in_channels, 1), jnp.float32)
    beta = 0.1 * jax.random.normal(kb, (in_channels, 1), jnp.float32)

    run = functools.partial(depthwise_separable_conv, kernel_size=kernel_size,
                            stride=stride, padding=padding, dilation=dilation)
    ref_fn = functools.partial(_reference, kernel_size=kernel_size, stride=stride,
                               padding=padding, dilation=dilation)

    # --- path A: fused single-pass kernel (whole sample resident in VMEM) ------------
    N, T = 2, 16
    x = jax.random.normal(kx, (N, in_channels, T), jnp.float32)
    out = jax.block_until_ready(run(x, w_dw, prelu_a, gamma, beta, w_pw))
    ref = ref_fn(x, w_dw, prelu_a, gamma, beta, w_pw)
    assert out.shape == ref.shape
    assert jnp.allclose(out, ref, atol=1e-4, rtol=1e-4), float(jnp.max(jnp.abs(out - ref)))

    # --- path B: two-pass tiled kernel with in-kernel (manual-DMA) halo windows ------
    T2 = 300
    x2 = jax.random.normal(kx2, (N, in_channels, T2), jnp.float32)
    out2 = jax.block_until_ready(
        run(x2, w_dw, prelu_a, gamma, beta, w_pw, t_tile=128, force_two_pass=True))
    ref2 = ref_fn(x2, w_dw, prelu_a, gamma, beta, w_pw)
    assert out2.shape == ref2.shape
    assert jnp.allclose(out2, ref2, atol=1e-4, rtol=1e-4), float(jnp.max(jnp.abs(out2 - ref2)))

    print("KERNEL_OK")
</pallas_src>

<mosaic_0001>
module attributes {stable_mosaic.version = 11 : i64} {
  func.func @_fused_kernel(%arg0: i32, %arg1: memref<1x4x20xf32, #tpu.memory_space<vmem>>, %arg2: memref<4x3xf32, #tpu.memory_space<vmem>>, %arg3: memref<4x1xf32, #tpu.memory_space<vmem>>, %arg4: memref<8x4xf32, #tpu.memory_space<vmem>>, %arg5: memref<8x1xf32, #tpu.memory_space<vmem>>, %arg6: memref<1x8x16xf32, #tpu.memory_space<vmem>>) attributes {dimension_semantics = [#tpu.dimension_semantics<parallel>], iteration_bounds = array<i64: 2>, scalar_prefetch = 0 : i64, scratch_operands = 0 : i64, tpu.core_type = #tpu.core_type<tc>, window_params = [{transform_indices = @transform_0, window_bounds = array<i64: 1, 4, 20>}, {pipeline_mode = #tpu.pipeline_mode<synchronous>, transform_indices = @transform_1, window_bounds = array<i64: 4, 3>}, {pipeline_mode = #tpu.pipeline_mode<synchronous>, transform_indices = @transform_2, window_bounds = array<i64: 4, 1>}, {pipeline_mode = #tpu.pipeline_mode<synchronous>, transform_indices = @transform_3, window_bounds = array<i64: 8, 4>}, {pipeline_mode = #tpu.pipeline_mode<synchronous>, transform_indices = @transform_4, window_bounds = array<i64: 8, 1>}, {transform_indices = @transform_5, window_bounds = array<i64: 1, 8, 16>}]} {
    %c0 = arith.constant 0 : index
    %c0_0 = arith.constant 0 : index
    %0 = vector.load %arg2[%c0, %c0_0] : memref<4x3xf32, #tpu.memory_space<vmem>>, vector<4x3xf32>
    %c0_1 = arith.constant 0 : index
    %c0_2 = arith.constant 0 : index
    %1 = vector.load %arg3[%c0_1, %c0_2] : memref<4x1xf32, #tpu.memory_space<vmem>>, vector<4x1xf32>
    %cst = arith.constant 0.000000e+00 : f32
    %2 = vector.broadcast %cst : f32 to vector<4x16xf32>
    %c0_3 = arith.constant 0 : index
    %c0_4 = arith.constant 0 : index
    %c0_5 = arith.constant 0 : index
    %3 = vector.load %arg1[%c0_3, %c0_4, %c0_5] : memref<1x4x20xf32, #tpu.memory_space<vmem>>, vector<1x4x16xf32>
    %4 = vector.shape_cast %3 : vector<1x4x16xf32> to vector<4x16xf32>
    %5 = vector.extract_strided_slice %0 {offsets = [0, 0], sizes = [4, 1], strides = [1, 1]} : vector<4x3xf32> to vector<4x1xf32>
    %6 = vector.broadcast %5 : vector<4x1xf32> to vector<4x16xf32>
    %7 = arith.mulf %6, %4 : vector<4x16xf32>
    %8 = arith.addf %2, %7 : vector<4x16xf32>
    %c0_6 = arith.constant 0 : index
    %c0_7 = arith.constant 0 : index
    %c2 = arith.constant 2 : index
    %9 = vector.load %arg1[%c0_6, %c0_7, %c2] : memref<1x4x20xf32, #tpu.memory_space<vmem>>, vector<1x4x16xf32>
    %10 = vector.shape_cast %9 : vector<1x4x16xf32> to vector<4x16xf32>
    %11 = vector.extract_strided_slice %0 {offsets = [0, 1], sizes = [4, 1], strides = [1, 1]} : vector<4x3xf32> to vector<4x1xf32>
    %12 = vector.broadcast %11 : vector<4x1xf32> to vector<4x16xf32>
    %13 = arith.mulf %12, %10 : vector<4x16xf32>
    %14 = arith.addf %8, %13 : vector<4x16xf32>
    %c0_8 = arith.constant 0 : index
    %c0_9 = arith.constant 0 : index
    %c4 = arith.constant 4 : index
    %15 = vector.load %arg1[%c0_8, %c0_9, %c4] : memref<1x4x20xf32, #tpu.memory_space<vmem>>, vector<1x4x16xf32>
    %16 = vector.shape_cast %15 : vector<1x4x16xf32> to vector<4x16xf32>
    %17 = vector.extract_strided_slice %0 {offsets = [0, 2], sizes = [4, 1], strides = [1, 1]} : vector<4x3xf32> to vector<4x1xf32>
    %18 = vector.broadcast %17 : vector<4x1xf32> to vector<4x16xf32>
    %19 = arith.mulf %18, %16 : vector<4x16xf32>
    %20 = arith.addf %14, %19 : vector<4x16xf32>
    %cst_10 = arith.constant 0.000000e+00 : f32
    %21 = vector.broadcast %cst_10 : f32 to vector<4x16xf32>
    %22 = arith.cmpf oge, %20, %21 : vector<4x16xf32>
    %23 = vector.broadcast %1 : vector<4x1xf32> to vector<4x16xf32>
    %24 = arith.mulf %23, %20 : vector<4x16xf32>
    %25 = arith.select %22, %20, %24 : vector<4x16xi1>, vector<4x16xf32>
    %cst_11 = arith.constant dense<0.000000e+00> : vector<4xf32>
    %26 = vector.multi_reduction <add>, %25, %cst_11 [1] : vector<4x16xf32> to vector<4xf32>
    %27 = vector.shape_cast %26 : vector<4xf32> to vector<4x1xf32>
    %cst_12 = arith.constant dense<0.000000e+00> : vector<1xf32>
    %28 = vector.multi_reduction <add>, %27, %cst_12 [0] : vector<4x1xf32> to vector<1xf32>
    %29 = vector.shape_cast %28 : vector<1xf32> to vector<1x1xf32>
    %cst_13 = arith.constant 6.400000e+01 : f32
    %30 = vector.broadcast %cst_13 : f32 to vector<1x1xf32>
    %31 = arith.divf %29, %30 : vector<1x1xf32>
    %32 = vector.broadcast %31 : vector<1x1xf32> to vector<4x16xf32>
    %33 = arith.subf %25, %32 : vector<4x16xf32>
    %34 = arith.mulf %33, %33 : vector<4x16xf32>
    %cst_14 = arith.constant dense<0.000000e+00> : vector<4xf32>
    %35 = vector.multi_reduction <add>, %34, %cst_14 [1] : vector<4x16xf32> to vector<4xf32>
    %36 = vector.shape_cast %35 : vector<4xf32> to vector<4x1xf32>
    %cst_15 = arith.constant dense<0.000000e+00> : vector<1xf32>
    %37 = vector.multi_reduction <add>, %36, %cst_15 [0] : vector<4x1xf32> to vector<1xf32>
    %38 = vector.shape_cast %37 : vector<1xf32> to vector<1x1xf32>
    %cst_16 = arith.constant 6.400000e+01 : f32
    %39 = vector.broadcast %cst_16 : f32 to vector<1x1xf32>
    %40 = arith.divf %38, %39 : vector<1x1xf32>
    %cst_17 = arith.constant 9.99999993E-9 : f32
    %41 = vector.broadcast %cst_17 : f32 to vector<1x1xf32>
    %42 = arith.addf %40, %41 : vector<1x1xf32>
    %43 = math.rsqrt %42 : vector<1x1xf32>
    %c0_18 = arith.constant 0 : index
    %c0_19 = arith.constant 0 : index
    %44 = vector.load %arg4[%c0_18, %c0_19] : memref<8x4xf32, #tpu.memory_space<vmem>>, vector<8x4xf32>
    %45 = vector.broadcast %43 : vector<1x1xf32> to vector<4x16xf32>
    %46 = arith.mulf %33, %45 : vector<4x16xf32>
    %c0_20 = arith.constant 0 : index
    %c0_21 = arith.constant 0 : index
    %47 = vector.load %arg5[%c0_20, %c0_21] : memref<8x1xf32, #tpu.memory_space<vmem>>, vector<8x1xf32>
    %cst_22 = arith.constant dense<0.000000e+00> : vector<8x16xf32>
    %48 = tpu.matmul %44, %46, %cst_22 {dimension_numbers = #tpu.dot_dimension_numbers<[1], [0], [0], [1], [0, 0, 1, 1], [], []>} : vector<8x4xf32>, vector<4x16xf32>, vector<8x16xf32> -> vector<8x16xf32>
    %49 = vector.broadcast %47 : vector<8x1xf32> to vector<8x16xf32>
    %50 = arith.addf %48, %49 : vector<8x16xf32>
    %c0_23 = arith.constant 0 : index
    %c0_24 = arith.constant 0 : index
    %c0_25 = arith.constant 0 : index
    %51 = vector.load %arg6[%c0_23, %c0_24, %c0_25] : memref<1x8x16xf32, #tpu.memory_space<vmem>>, vector<1x8x16xf32>
    %52 = vector.shape_cast %51 : vector<1x8x16xf32> to vector<8x16xf32>
    %53 = vector.shape_cast %50 : vector<8x16xf32> to vector<1x8x16xf32>
    tpu.vector_store %arg6[%c0_23, %c0_24, %c0_25], %53 {strides = array<i32>} : memref<1x8x16xf32, #tpu.memory_space<vmem>>, vector<1x8x16xf32>,
    return
  }
  func.func @transform_0(%arg0: i32) -> (i32, i32, i32) {
    %c0_i32 = arith.constant 0 : i32
    %c0_i32_0 = arith.constant 0 : i32
    %c0_i32_1 = arith.constant 0 : i32
    return %arg0, %c0_i32, %c0_i32_0 : i32, i32, i32
  }
  func.func @transform_1(%arg0: i32) -> (i32, i32) {
    %c0_i32 = arith.constant 0 : i32
    %c0_i32_0 = arith.constant 0 : i32
    %c0_i32_1 = arith.constant 0 : i32
    return %c0_i32, %c0_i32_0 : i32, i32
  }
  func.func @transform_2(%arg0: i32) -> (i32, i32) {
    %c0_i32 = arith.constant 0 : i32
    %c0_i32_0 = arith.constant 0 : i32
    %c0_i32_1 = arith.constant 0 : i32
    return %c0_i32, %c0_i32_0 : i32, i32
  }
  func.func @transform_3(%arg0: i32) -> (i32, i32) {
    %c0_i32 = arith.constant 0 : i32
    %c0_i32_0 = arith.constant 0 : i32
    %c0_i32_1 = arith.constant 0 : i32
    return %c0_i32, %c0_i32_0 : i32, i32
  }
  func.func @transform_4(%arg0: i32) -> (i32, i32) {
    %c0_i32 = arith.constant 0 : i32
    %c0_i32_0 = arith.constant 0 : i32
    %c0_i32_1 = arith.constant 0 : i32
    return %c0_i32, %c0_i32_0 : i32, i32
  }
  func.func @transform_5(%arg0: i32) -> (i32, i32, i32) {
    %c0_i32 = arith.constant 0 : i32
    %c0_i32_0 = arith.constant 0 : i32
    %c0_i32_1 = arith.constant 0 : i32
    return %arg0, %c0_i32, %c0_i32_0 : i32, i32, i32
  }
}

</mosaic_0001>

<llo_original>
// kernel: tpu_custom_call.1
$region0: #{tpu_custom_call.1}
  #allocation0 [shape = 'u32[]', space=smem, size = 0x4, offset = 0x4, fixed_abs, tag = 'smem constant byte address 0x4 - core index']
  #allocation1 [shape = 'u32[144,128]{1,0:T(1,128)}', space=vmem, size = 0x12000, scoped, tag = 'internal scratch']
  %s0 = inlined_call_operand.vmem [shape: f32[2,4,20], index: 0, kind: input, shape index: {}]
  %s1 = inlined_call_operand.vmem [shape: f32[4,3], index: 1, kind: input, shape index: {}]
  %s2 = inlined_call_operand.vmem [shape: f32[4,1], index: 2, kind: input, shape index: {}]
  %s3 = inlined_call_operand.vmem [shape: f32[8,4], index: 3, kind: input, shape index: {}]
  %s4 = inlined_call_operand.vmem [shape: f32[8,1], index: 4, kind: input, shape index: {}]
  %s5 = inlined_call_operand.hbm [shape: f32[2,8,16], index: 5, kind: output, shape index: {}]
  %s6 = sld [smem:[#allocation0]]
  $region53: #{tpu_custom_call.1} parent=0
    _
  %s8 = ssub.s32 1, %s6
  %s9 = scalar_select 0, %s8, %s6
  $region1: #{tpu_custom_call.1} parent=0
    #allocation2 [shape = 'u8[8192]{0}', space=vmem, size = 0x2000, scoped, tag = 'output window, operand 0']
    #allocation3 [shape = 's32[2]{0}', space=sflag, size = 0x8, scoped, tag = 'scoped memory for tpu_custom_call.1']
    %10 = vsyncpa [#allocation3], 0
    %s11 = scalar_lea.sflag [#allocation3], 1
    %12 = vsyncpa %s11, 0
    loop: start=0, step=1, limit=4
    $region2: #{tpu_custom_call.1} parent=1 // loop_pre_header
      _
    $region3: #{tpu_custom_call.1} parent=1 // loop_header
      %s14 = sphi 0, %s18
      %p15 = scmp.ge.s32.totalorder %s14, 4
      %s24 = sphi 0, %s26
      %s27 = sphi 0, %s24
      %s28 = sphi 0, %s27
      %s44 = sphi 0, %s28
      %s48 = sphi 0, %s48
      %s50 = sphi 0, %s48
      %s51 = sphi 0, %s50
      %s65 = sphi 0, %s51
      %s69 = sphi 0, %s69
      %s71 = sphi 0, %s69
      %s72 = sphi 0, %s71
      %s86 = sphi 0, %s72
      %s90 = sphi 0, %s90
      %s92 = sphi 0, %s90
      %s93 = sphi 0, %s92
      %s107 = sphi 0, %s93
      %s111 = sphi 0, %s111
      %s113 = sphi 0, %s111
      %s114 = sphi 0, %s113
      %s128 = sphi 0, %s114
      %s134 = sphi 0, %s136
      %s137 = sphi 0, %s134
      %s138 = sphi 0, %s137
      %s154 = sphi 0, %s138
    $region4: #{tpu_custom_call.1} parent=1 // loop_header_branch
      %17 = sbr.rel (%p15) target = $region8
    $region5: #{tpu_custom_call.1} parent=1 // loop_body
      %s19 = ssub.s32 %s14, 1
      %s20 = ssub.s32 %s14, 2
      %s21 = sadd.s32 %s14, 1
      %s22 = ssub.s32 %s14, %s21
      %p23 = scmp.eq.s32.totalorder %s22, 0
      %s25 = sadd.s32 %s24, 1
      %s26 = scalar_select %p23, %s24, %s25
      %p29 = pneg %p23
      %p30 = scmp.eq.s32.totalorder %s14, 1
      %p31 = por %p29, %p30
      %p32 = scmp.ne.s32.totalorder %s24, %s27
      %p33 = scmp.eq.s32.totalorder %s14, 0
      %p34 = por %p32, %p33
      %p35 = scmp.ne.s32.totalorder %s24, %s27
      %p36 = scmp.eq.s32.totalorder %s19, 1
      %p37 = por %p35, %p36
      %p38 = scmp.ne.s32.totalorder %s27, %s28
      %p39 = scmp.eq.s32.totalorder %s19, 0
      %p40 = por %p38, %p39
      %p41 = scmp.ne.s32.totalorder %s27, %s28
      %p42 = scmp.eq.s32.totalorder %s20, 1
      %p43 = por %p41, %p42
      %p45 = scmp.ne.s32.totalorder %s28, %s44
      %p46 = scmp.eq.s32.totalorder %s20, 0
      %p47 = por %p45, %p46
      %s49 = sadd.s32 %s48, 1
      %p52 = scmp.eq.s32.totalorder %s14, 1
      %p53 = scmp.ne.s32.totalorder %s48, %s50
      %p54 = scmp.eq.s32.totalorder %s14, 0
      %p55 = por %p53, %p54
      %p56 = scmp.ne.s32.totalorder %s48, %s50
      %p57 = scmp.eq.s32.totalorder %s19, 1
      %p58 = por %p56, %p57
      %p59 = scmp.ne.s32.totalorder %s50, %s51
      %p60 = scmp.eq.s32.totalorder %s19, 0
      %p61 = por %p59, %p60
      %p62 = scmp.ne.s32.totalorder %s50, %s51
      %p63 = scmp.eq.s32.totalorder %s20, 1
      %p64 = por %p62, %p63
      %p66 = scmp.ne.s32.totalorder %s51, %s65
      %p67 = scmp.eq.s32.totalorder %s20, 0
      %p68 = por %p66, %p67
      %s70 = sadd.s32 %s69, 1
      %p73 = scmp.eq.s32.totalorder %s14, 1
      %p74 = scmp.ne.s32.totalorder %s69, %s71
      %p75 = scmp.eq.s32.totalorder %s14, 0
      %p76 = por %p74, %p75
      %p77 = scmp.ne.s32.totalorder %s69, %s71
      %p78 = scmp.eq.s32.totalorder %s19, 1
      %p79 = por %p77, %p78
      %p80 = scmp.ne.s32.totalorder %s71, %s72
      %p81 = scmp.eq.s32.totalorder %s19, 0
      %p82 = por %p80, %p81
      %p83 = scmp.ne.s32.totalorder %s71, %s72
      %p84 = scmp.eq.s32.totalorder %s20, 1
      %p85 = por %p83, %p84
      %p87 = scmp.ne.s32.totalorder %s72, %s86
      %p88 = scmp.eq.s32.totalorder %s20, 0
      %p89 = por %p87, %p88
      %s91 = sadd.s32 %s90, 1
      %p94 = scmp.eq.s32.totalorder %s14, 1
      %p95 = scmp.ne.s32.totalorder %s90, %s92
      %p96 = scmp.eq.s32.totalorder %s14, 0
      %p97 = por %p95, %p96
      %p98 = scmp.ne.s32.totalorder %s90, %s92
      %p99 = scmp.eq.s32.totalorder %s19, 1
      %p100 = por %p98, %p99
      %p101 = scmp.ne.s32.totalorder %s92, %s93
      %p102 = scmp.eq.s32.totalorder %s19, 0
      %p103 = por %p101, %p102
      %p104 = scmp.ne.s32.totalorder %s92, %s93
      %p105 = scmp.eq.s32.totalorder %s20, 1
      %p106 = por %p104, %p105
      %p108 = scmp.ne.s32.totalorder %s93, %s107
      %p109 = scmp.eq.s32.totalorder %s20, 0
      %p110 = por %p108, %p109
      %s112 = sadd.s32 %s111, 1
      %p115 = scmp.eq.s32.totalorder %s14, 1
      %p116 = scmp.ne.s32.totalorder %s111, %s113
      %p117 = scmp.eq.s32.totalorder %s14, 0
      %p118 = por %p116, %p117
      %p119 = scmp.ne.s32.totalorder %s111, %s113
      %p120 = scmp.eq.s32.totalorder %s19, 1
      %p121 = por %p119, %p120
      %p122 = scmp.ne.s32.totalorder %s113, %s114
      %p123 = scmp.eq.s32.totalorder %s19, 0
      %p124 = por %p122, %p123
      %p125 = scmp.ne.s32.totalorder %s113, %s114
      %p126 = scmp.eq.s32.totalorder %s20, 1
      %p127 = por %p125, %p126
      %p129 = scmp.ne.s32.totalorder %s114, %s128
      %p130 = scmp.eq.s32.totalorder %s20, 0
      %p131 = por %p129, %p130
      %s132 = ssub.s32 %s14, %s21
      %p133 = scmp.eq.s32.totalorder %s132, 0
      %s135 = sadd.s32 %s134, 1
      %s136 = scalar_select %p133, %s134, %s135
      %p139 = pneg %p133
      %p140 = scmp.eq.s32.totalorder %s14, 1
      %p141 = por %p139, %p140
      %p142 = scmp.ne.s32.totalorder %s134, %s137
      %p143 = scmp.eq.s32.totalorder %s14, 0
      %p144 = por %p142, %p143
      %p145 = scmp.ne.s32.totalorder %s134, %s137
      %p146 = scmp.eq.s32.totalorder %s19, 1
      %p147 = por %p145, %p146
      %p148 = scmp.ne.s32.totalorder %s137, %s138
      %p149 = scmp.eq.s32.totalorder %s19, 0
      %p150 = por %p148, %p149
      %p151 = scmp.ne.s32.totalorder %s137, %s138
      %p152 = scmp.eq.s32.totalorder %s20, 1
      %p153 = por %p151, %p152
      %p155 = scmp.ne.s32.totalorder %s138, %s154
      %p156 = scmp.eq.s32.totalorder %s20, 0
      %p157 = por %p155, %p156
      %p158 = scmp.le.s32.totalorder 1, %s14
      %p159 = scmp.lt.s32.totalorder %s14, 3
      %p160 = pnand %p158, %p159
      %p161 = pneg %p160
      // Predicated region
      $region9: #{tpu_custom_call.1} parent=5 // pred_check
        _
      $region10: #{tpu_custom_call.1} parent=5 // pred_check_branch
        %163 = sbr.rel (%p160) target = $region12
      $region11: #{tpu_custom_call.1} parent=5 // pred_region
        %s164 = ssub.s32 %s14, 1
        // Predicated region
        $region13: #{tpu_custom_call.1} parent=11 // pred_check
          %p165 = pneg %p61
        $region14: #{tpu_custom_call.1} parent=11 // pred_check_branch
          %167 = sbr.rel (%p165) target = $region16
        $region15: #{tpu_custom_call.1} parent=11 // pred_region
          _
        $region16: #{tpu_custom_call.1} parent=11 // pred_fallthru
          _
        // Predicated region
        $region17: #{tpu_custom_call.1} parent=11 // pred_check
          %p168 = pneg %p82
        $region18: #{tpu_custom_call.1} parent=11 // pred_check_branch
          %170 = sbr.rel (%p168) target = $region20
        $region19: #{tpu_custom_call.1} parent=11 // pred_region
          _
        $region20: #{tpu_custom_call.1} parent=11 // pred_fallthru
          _
        // Predicated region
        $region21: #{tpu_custom_call.1} parent=11 // pred_check
          %p171 = pneg %p103
        $region22: #{tpu_custom_call.1} parent=11 // pred_check_branch
          %173 = sbr.rel (%p171) target = $region24
        $region23: #{tpu_custom_call.1} parent=11 // pred_region
          _
        $region24: #{tpu_custom_call.1} parent=11 // pred_fallthru
          _
        // Predicated region
        $region25: #{tpu_custom_call.1} parent=11 // pred_check
          %p174 = pneg %p124
        $region26: #{tpu_custom_call.1} parent=11 // pred_check_branch
          %176 = sbr.rel (%p174) target = $region28
        $region27: #{tpu_custom_call.1} parent=11 // pred_region
          _
        $region28: #{tpu_custom_call.1} parent=11 // pred_fallthru
          _
      $region12: #{tpu_custom_call.1} parent=5 // pred_fallthru
        _
      %p177 = scmp.lt.s32.totalorder %s14, 2
      // Predicated region
      $region29: #{tpu_custom_call.1} parent=5 // pred_check
        %p178 = pneg %p177
      $region30: #{tpu_custom_call.1} parent=5 // pred_check_branch
        %180 = sbr.rel (%p178) target = $region32
      $region31: #{tpu_custom_call.1} parent=5 // pred_region
        // Predicated region
        $region33: #{tpu_custom_call.1} parent=31 // pred_check
          %p181 = pneg %p34
        $region34: #{tpu_custom_call.1} parent=31 // pred_check_branch
          %183 = sbr.rel (%p181) target = $region36
        $region35: #{tpu_custom_call.1} parent=31 // pred_region
          %p184 = scmp.lt.s32.totalorder %s14, 1
          %s185 = scalar_select %p184, %s14, 1
          %s186 = smul.addr %s185, 4
          %s187 = scalar_lea.vmem %s0, %s186
        $region36: #{tpu_custom_call.1} parent=31 // pred_fallthru
          _
      $region32: #{tpu_custom_call.1} parent=5 // pred_fallthru
        _
      %p188 = scmp.le.s32.totalorder 1, %s14
      %p189 = scmp.lt.s32.totalorder %s14, 3
      %p190 = pnand %p188, %p189
      %p191 = pneg %p190
      // Predicated region
      $region37: #{tpu_custom_call.1} parent=5 // pred_check
        _
      $region38: #{tpu_custom_call.1} parent=5 // pred_check_branch
        %193 = sbr.rel (%p190) target = $region40
      $region39: #{tpu_custom_call.1} parent=5 // pred_region
        %s194 = ssub.s32 %s14, 1
        %p195 = scmp.lt.s32.totalorder %s19, 1
        %s196 = scalar_select %p195, %s19, 1
        %s197 = smul.addr %s196, 4
        %s198 = scalar_lea.vmem %s0, %s197
        %p199 = pneg %p40
        %p200 = pneg %p37
        %p201 = pneg %p61
        %p202 = pneg %p58
        %p203 = pneg %p82
        %p204 = pneg %p79
        %p205 = pneg %p103
        %p206 = pneg %p100
        %p207 = pneg %p124
        %p208 = pneg %p121
        %p209 = pneg %p150
        %p210 = pneg %p147
        %s211 = sand.u32 %s137, 1
        %s212 = scalar_lea.sflag [#allocation3], %s211
        %s213 = sand.u32 %s137, 1
        %s214 = smul.addr %s213, 8
        %s215 = scalar_lea.vmem [#allocation2], %s214
        %p216 = scmp.lt.s32.totalorder %s19, 1
        %s217 = scalar_select %p216, %s19, 1
        %s218 = smul.addr %s217, 4
        %s219 = scalar_lea.vmem %s0, %s218
        %v220 = vld [vmem:[%s1] sm:$0xf]
        %v221 = vld [vmem:[%s2] sm:$0xf]
        %v222 = vld [vmem:[%s219] sm:$0xf]
        %224 = vset.pattern.permute.xlu0 0
        %225 = vperm.xlu0 %224, %v220
        %v226 = vpop.permute.xlu0 %225
        %v228 = vmul.f32 %v226, %v222
        %v229 = vadd.f32 %v228, 0.0
        %230 = vset.pattern.permute.xlu0 1
        %231 = vperm.xlu0 %230, %v220
        %v232 = vpop.permute.xlu0 %231
        %v234 = vmul.f32 %v232, %v222
        %236 = vrot.lane.b32.xlu0 %v234, 126
        %v237 = vpop.permute.xlu0 %236
        %v239 = vadd.f32 %v229, %v237
        %240 = vset.pattern.permute.xlu0 2
        %241 = vperm.xlu0 %240, %v220
        %v242 = vpop.permute.xlu0 %241
        %v244 = vmul.f32 %v242, %v222
        %246 = vrot.lane.b32.xlu0 %v244, 124
        %v247 = vpop.permute.xlu0 %246
        %v249 = vadd.f32 %v239, %v247
        %vm250 = vcmp.ge.f32.partialorder %v249, 0.0
        %252 = vset.pattern.permute.xlu0 0
        %253 = vperm.xlu0 %252, %v221
        %v254 = vpop.permute.xlu0 %253
        %v256 = vmul.f32 %v254, %v249
        %v257 = vsel %vm250, %v249, %v256
        %vm258 = vcmask 125952
        %v259 = vsel %vm258, %v257, 0.0
        %260 = vadd.xlane.f32.xlu0 %v259
        %v261 = vpop.xlane.xlu0 %260
        %vm262 = vcmask 1043456
        %v263 = vsel %vm262, %v261, 0.0
        %v264 = vrot.slane %v263, 4
        %v265 = vadd.f32 %v263, %v264
        %v266 = vrot.slane %v265, 2
        %v267 = vadd.f32 %v265, %v266
        %v268 = vrot.slane %v267, 1
        %v269 = vadd.f32 %v267, %v268
        %v270 = vrcp.pop 64.0
        %v271 = vmul.f32 %v269, %v270
        %v272 = vsub.f32 %v257, %v271
        %v273 = vmul.f32 %v272, %v272
        %v274 = vsel %vm258, %v273, 0.0
        %275 = vadd.xlane.f32.xlu0 %v274
        %v276 = vpop.xlane.xlu0 %275
        %v277 = vsel %vm262, %v276, 0.0
        %v278 = vrot.slane %v277, 4
        %v279 = vadd.f32 %v277, %v278
        %v280 = vrot.slane %v279, 2
        %v281 = vadd.f32 %v279, %v280
        %v282 = vrot.slane %v281, 1
        %v283 = vadd.f32 %v281, %v282
        %v284 = vmul.f32 %v283, %v270
        %v285 = vadd.f32 %v284, 1e-08
        %v286 = vrsqrt.pop %v285
        %v287 = vld [vmem:[%s3] sm:$0xff]
        %v288 = vmul.f32 %v272, %v286
        %v289 = vld [vmem:[%s4] sm:$0xff]
        %291 = vset.pattern.permute.xlu0 0
        %292 = vperm.xlu0 %291, %v289
        %v293 = vpop.permute.xlu0 %292
        %vm295 = vcmask 31744
        %v297 = vsel %vm295, %v287, 0
        %v300 = vsel %vm262, %v288, 0
        %302 = vmatprep.subr.mxu0 0.0
        %303 = vmatpush1.msra.mxu0 %v300
        %304 = vmatprep.subr.mxu0 0.0
        %305 = vmatpush1.msra.mxu0 0.0
        %306 = vmatprep.subr.mxu0 0.0
        %307 = vmatpush1.msra.mxu0 0.0
        %308 = vmatprep.subr.mxu0 0.0
        %309 = vmatpush1.msra.mxu0 0.0
        %310 = vmatprep.subr.mxu0 0.0
        %311 = vmatpush1.msra.mxu0 0.0
        %312 = vmatprep.subr.mxu0 0.0
        %313 = vmatpush1.msra.mxu0 0.0
        %314 = vmatprep.subr.mxu0 0.0
        %315 = vmatpush1.msra.mxu0 0.0
        %316 = vmatprep.subr.mxu0 0.0
        %317 = vmatpush1.msra.mxu0 0.0
        %318 = vmatprep.subr.mxu0 0.0
        %319 = vmatpush1.msra.mxu0 0.0
        %320 = vmatprep.subr.mxu0 0.0
        %321 = vmatpush1.msra.mxu0 0.0
        %322 = vmatprep.subr.mxu0 0.0
        %323 = vmatpush1.msra.mxu0 0.0
        %324 = vmatprep.subr.mxu0 0.0
        %325 = vmatpush1.msra.mxu0 0.0
        %326 = vmatprep.subr.mxu0 0.0
        %327 = vmatpush1.msra.mxu0 0.0
        %328 = vmatprep.subr.mxu0 0.0
        %329 = vmatpush1.msra.mxu0 0.0
        %330 = vmatprep.subr.mxu0 0.0
        %331 = vmatpush1.msra.mxu0 0.0
        %332 = vmatprep.subr.mxu0 0.0
        %333 = vmatpush1.msra.mxu0 0.0
        %334 = vmatprep.subr.mxu0 0.0
        %335 = vmatpush1.msra.mxu0 0.0
        %336 = vmatprep.subr.mxu0 0.0
        %337 = vmatpush1.msra.mxu0 0.0
        %338 = vmatprep.subr.mxu0 0.0
        %339 = vmatpush1.msra.mxu0 0.0
        %340 = vmatprep.subr.mxu0 0.0
        %341 = vmatpush1.msra.mxu0 0.0
        %342 = vmatprep.subr.mxu0 0.0
        %343 = vmatpush1.msra.mxu0 0.0
        %344 = vmatprep.subr.mxu0 0.0
        %345 = vmatpush1.msra.mxu0 0.0
        %346 = vmatprep.subr.mxu0 0.0
        %347 = vmatpush1.msra.mxu0 0.0
        %348 = vmatprep.subr.mxu0 0.0
        %349 = vmatpush1.msra.mxu0 0.0
        %350 = vmatprep.subr.mxu0 0.0
        %351 = vmatpush1.msra.mxu0 0.0
        %352 = vmatprep.subr.mxu0 0.0
        %353 = vmatpush1.msra.mxu0 0.0
        %354 = vmatprep.subr.mxu0 0.0
        %355 = vmatpush1.msra.mxu0 0.0
        %356 = vmatprep.subr.mxu0 0.0
        %357 = vmatpush1.msra.mxu0 0.0
        %358 = vmatprep.subr.mxu0 0.0
        %359 = vmatpush1.msra.mxu0 0.0
        %360 = vmatprep.subr.mxu0 0.0
        %361 = vmatpush1.msra.mxu0 0.0
        %362 = vmatprep.subr.mxu0 0.0
        %363 = vmatpush1.msra.mxu0 0.0
        %364 = vmatprep.subr.mxu0 0.0
        %365 = vmatpush1.msra.mxu0 0.0
        %366 = vmatprep.mubr.f32.mxu0 0.0
        %367 = vmatmul.mubr.f32.gmra.mrb[0].mxu0 %v297
        %v368 = vpop.f32.mrb[0].mxu0
        %v369 = vadd.f32 %v293, %v368
        %v370 = vpop.f32.mrb[0].mxu0
        %371 = vdwg.mxu0
        %vm372 = vcmask 130048
        %373 = vst.msk [vmem:[%s215] sm:$0xff] %vm372, %v369
        %s374 = sand.u32 %s137, 1
        %s375 = scalar_lea.sflag [#allocation3], %s374
        %s376 = sand.u32 %s137, 1
        %s377 = smul.addr %s376, 8
        %s378 = scalar_lea.vmem [#allocation2], %s377
        // Predicated region
        $region41: #{tpu_custom_call.1} parent=39 // pred_check
          %p379 = pneg %p147
        $region42: #{tpu_custom_call.1} parent=39 // pred_check_branch
          %381 = sbr.rel (%p379) target = $region44
        $region43: #{tpu_custom_call.1} parent=39 // pred_region
          %s383 = ssub.s32 128, 128
          %384 = vsyncadd %s375, %s383
          %s385 = smul.addr %s19, 128
          %s386 = scalar_lea.hbm %s5, %s385
          %s388 = sshll.u32 %s378, 4
          %s389 = int_to_ptr.vmem [resolvable:$true] %s388
          %391 = dma.vmem_to_hbm [thread:$0]  %s389, 128, %s386, %s375
        $region44: #{tpu_custom_call.1} parent=39 // pred_fallthru
          _
      $region40: #{tpu_custom_call.1} parent=5 // pred_fallthru
        _
      %p392 = scmp.le.s32.totalorder 2, %s14
      // Predicated region
      $region45: #{tpu_custom_call.1} parent=5 // pred_check
        %p393 = pneg %p392
      $region46: #{tpu_custom_call.1} parent=5 // pred_check_branch
        %395 = sbr.rel (%p393) target = $region48
      $region47: #{tpu_custom_call.1} parent=5 // pred_region
        %s396 = ssub.s32 %s14, 2
        // Predicated region
        $region49: #{tpu_custom_call.1} parent=47 // pred_check
          %p397 = pneg %p153
        $region50: #{tpu_custom_call.1} parent=47 // pred_check_branch
          %399 = sbr.rel (%p397) target = $region52
        $region51: #{tpu_custom_call.1} parent=47 // pred_region
          %s400 = sand.u32 %s138, 1
          %s401 = scalar_lea.sflag [#allocation3], %s400
          %s402 = sand.u32 %s138, 1
          %s403 = smul.addr %s402, 8
          %s404 = scalar_lea.vmem [#allocation2], %s403
          %405 = dma.done %s401, 128
        $region52: #{tpu_custom_call.1} parent=47 // pred_fallthru
          _
      $region48: #{tpu_custom_call.1} parent=5 // pred_fallthru
        _
    $region6: #{tpu_custom_call.1} parent=1 // loop_footer
      %s18 = sadd.s32 1, %s14
    $region7: #{tpu_custom_call.1} parent=1 // loop_footer_branch
      %13 = sbr.rel target = $region3
    $region8: #{tpu_custom_call.1} parent=1 // loop_exit
      _
    %406 = vsyncpa [#allocation3], 1
    %s407 = scalar_lea.sflag [#allocation3], 1
    %408 = vsyncpa %s407, 1

</llo_original>
